<compile_context>
chip_gen: v7x
topology: tpu7x:2x2x1
jax: 0.10.0
libtpu: 0.0.40
codegen_flags: <defaults>
</compile_context>

<pallas_src>
import functools

import jax
import jax.numpy as jnp
from jax.experimental import pallas as pl
from jax.experimental.pallas import tpu as pltpu


def _round_up(x, m):
    return ((x + m - 1) // m) * m


@functools.lru_cache(maxsize=None)
def _vmem_budget_bytes():
    """~75% of physical VMEM (generation-aware); conservative v7x-sized fallback."""
    try:
        cap = int(pltpu.get_tpu_info().vmem_capacity_bytes)
    except Exception:
        cap = 64 * 1024 * 1024  # safe everywhere (v7x physical size)
    return (cap * 3) // 4


@functools.lru_cache(maxsize=None)
def _num_tensorcores():
    try:
        kind = jax.devices()[0].device_kind.lower()
    except Exception:
        return 1
    return 2 if "v7" in kind else 1  # v7x parts have 2 TensorCores per chip


# ----------------------------- kernels -----------------------------

def _affine_fused_kernel(x_ref, w_ref, b_ref, o_ref):
    # One MXU matmul over the full K + bias add (bias row broadcasts over output rows).
    o_ref[...] = (
        jnp.dot(x_ref[...], w_ref[...], preferred_element_type=jnp.float32)
        + b_ref[...].astype(jnp.float32)
    ).astype(o_ref.dtype)


def _affine_reduce_kernel(x_ref, w_ref, b_ref, o_ref, acc_ref, *, k_rem):
    # Grid = (i, j, k); axis 2 walks the K reduction.
    k = pl.program_id(2)
    nk = pl.num_programs(2)

    @pl.when(k == 0)
    def _():
        # Fold the bias into the accumulator init -> no extra VPU pass in the epilogue.
        acc_ref[...] = jnp.broadcast_to(b_ref[...].astype(jnp.float32), acc_ref.shape)

    if k_rem:
        # K does not divide tk: the last k block's tail columns/rows are unspecified
        # (possibly NaN), so mask BOTH operands to zero there before the matmul.
        @pl.when(k == nk - 1)
        def _():
            x = x_ref[...]
            w = w_ref[...]
            col = jax.lax.broadcasted_iota(jnp.int32, x.shape, 1)
            row = jax.lax.broadcasted_iota(jnp.int32, w.shape, 0)
            xm = jnp.where(col < k_rem, x, jnp.zeros_like(x))
            wm = jnp.where(row < k_rem, w, jnp.zeros_like(w))
            acc_ref[...] += jnp.dot(xm, wm, preferred_element_type=jnp.float32)

        @pl.when(k != nk - 1)
        def _():
            acc_ref[...] += jnp.dot(x_ref[...], w_ref[...],
                                    preferred_element_type=jnp.float32)
    else:
        acc_ref[...] += jnp.dot(x_ref[...], w_ref[...],
                                preferred_element_type=jnp.float32)

    @pl.when(k == nk - 1)
    def _():
        o_ref[...] = acc_ref[...].astype(o_ref.dtype)


# ----------------------------- wrapper -----------------------------

_SINGLE_BLOCK_BYTES = 1 * 1024 * 1024   # whole problem below this -> one fused VMEM block
_FULL_K_CAP = 4096                      # max K kept fully resident per tile (path 2)


@functools.partial(jax.jit, static_argnames=("tm", "tn", "tk"))
def affine_layer(x, w, b, *, tm=512, tn=512, tk=512):
    M, K = x.shape
    K2, N = w.shape
    assert K == K2 and b.shape == (N,)

    out_dtype = jnp.result_type(x.dtype, w.dtype, b.dtype)
    x_is = jnp.dtype(x.dtype).itemsize
    w_is = jnp.dtype(w.dtype).itemsize
    b_is = jnp.dtype(b.dtype).itemsize
    o_is = jnp.dtype(out_dtype).itemsize
    b2d = b.reshape(1, N)

    budget = _vmem_budget_bytes()

    # --- path 1: tiny problem -> single fused VMEM block, no grid ---
    total_bytes = M * K * x_is + K * N * w_is + N * b_is + M * N * o_is
    if total_bytes <= _SINGLE_BLOCK_BYTES:
        return pl.pallas_call(
            _affine_fused_kernel,
            out_shape=jax.ShapeDtypeStruct((M, N), out_dtype),
            in_specs=[
                pl.BlockSpec(memory_space=pltpu.MemorySpace.VMEM),
                pl.BlockSpec(memory_space=pltpu.MemorySpace.VMEM),
                pl.BlockSpec(memory_space=pltpu.MemorySpace.VMEM),
            ],
            out_specs=pl.BlockSpec(memory_space=pltpu.MemorySpace.VMEM),
        )(x, w, b2d)

    # Dtype-aware tile clamping: sublane multiple for rows, lane-dense (128) columns.
    sub = max(8, 32 // max(1, min(x_is, o_is)))   # f32 -> 8, bf16 -> 16, int8/fp8 -> 32
    tm = min(tm, _round_up(M, sub))
    tn = min(tn, _round_up(N, 128))

    def bytes_full_k(tm_, tn_):
        # Double-buffered x / w / bias panels + double-buffered output tile.
        return (2 * tm_ * K * x_is + 2 * K * tn_ * w_is
                + 2 * tn_ * b_is + 2 * tm_ * tn_ * o_is)

    # --- path 2: K resident per output tile (no accumulator, bias added inline) ---
    if K <= _FULL_K_CAP:
        # Prefer a fully resident W: one column panel spanning all of N means W's block index
        # never changes, so it is DMA'd from HBM exactly once for the whole kernel.
        tn_res = _round_up(N, 128)
        if tn_res != tn and bytes_full_k(tm, tn_res) <= budget:
            tn = tn_res

        if bytes_full_k(tm, tn) <= budget:
            # Give the second TensorCore work on 2-TC parts (v7x): split M, keep tn lane-dense.
            if (_num_tensorcores() >= 2 and pl.cdiv(M, tm) == 1
                    and pl.cdiv(N, tn) == 1 and M >= 2 * sub):
                tm = _round_up(pl.cdiv(M, 2), sub)

            gm, gn = pl.cdiv(M, tm), pl.cdiv(N, tn)
            # Re-stream whichever operand is cheaper; the other one's block index stays
            # constant along the fast grid axis so Pallas skips its re-DMA.
            traffic_i_outer = M * K * x_is + gm * K * N * w_is   # fast axis = j (W streamed)
            traffic_j_outer = K * N * w_is + gn * M * K * x_is   # fast axis = i (x streamed)
            if traffic_i_outer <= traffic_j_outer:
                grid = (gm, gn)
                in_specs = [
                    pl.BlockSpec((tm, K), lambda i, j: (i, 0)),
                    pl.BlockSpec((K, tn), lambda i, j: (0, j)),
                    pl.BlockSpec((1, tn), lambda i, j: (0, j)),
                ]
                out_spec = pl.BlockSpec((tm, tn), lambda i, j: (i, j))
            else:
                grid = (gn, gm)
                in_specs = [
                    pl.BlockSpec((tm, K), lambda j, i: (i, 0)),
                    pl.BlockSpec((K, tn), lambda j, i: (0, j)),
                    pl.BlockSpec((1, tn), lambda j, i: (0, j)),
                ]
                out_spec = pl.BlockSpec((tm, tn), lambda j, i: (i, j))

            return pl.pallas_call(
                _affine_fused_kernel,
                out_shape=jax.ShapeDtypeStruct((M, N), out_dtype),
                grid_spec=pltpu.PrefetchScalarGridSpec(
                    num_scalar_prefetch=0,
                    grid=grid,
                    in_specs=in_specs,
                    out_specs=out_spec,
                ),
                compiler_params=pltpu.CompilerParams(
                    dimension_semantics=("parallel", "parallel"),
                    vmem_limit_bytes=int(budget),
                ),
            )(x, w, b2d)

    # --- path 3: large K -> 3-D grid with K reduction (no host-side padding) ---
    tk = min(tk, _round_up(K, 128))

    def bytes_reduce(tm_, tn_, tk_):
        return (2 * tm_ * tk_ * x_is + 2 * tk_ * tn_ * w_is + 2 * tn_ * b_is
                + 2 * tm_ * tn_ * o_is + tm_ * tn_ * 4)

    # Shrink tiles if (unusually) over the per-generation VMEM budget.
    while bytes_reduce(tm, tn, tk) > budget and tk > 256:
        tk = max(256, (tk // 2 // 128) * 128)
    while bytes_reduce(tm, tn, tk) > budget and tn > 256:
        tn = max(256, (tn // 2 // 128) * 128)
    while bytes_reduce(tm, tn, tk) > budget and tm > 2 * sub:
        tm = max(sub, _round_up(tm // 2, sub))

    # Prefer a tk that divides K exactly (no tail); otherwise mask the tail in-kernel.
    if K % tk != 0:
        d = (min(tk, K) // 128) * 128
        while d >= 256:
            if K % d == 0:
                tk = d
                break
            d -= 128
    k_rem = K % tk

    grid = (pl.cdiv(M, tm), pl.cdiv(N, tn), pl.cdiv(K, tk))
    return pl.pallas_call(
        functools.partial(_affine_reduce_kernel, k_rem=k_rem),
        out_shape=jax.ShapeDtypeStruct((M, N), out_dtype),
        grid_spec=pltpu.PrefetchScalarGridSpec(
            num_scalar_prefetch=0,
            grid=grid,
            in_specs=[
                pl.BlockSpec((tm, tk), lambda i, j, k: (i, k)),
                pl.BlockSpec((tk, tn), lambda i, j, k: (k, j)),
                pl.BlockSpec((1, tn), lambda i, j, k: (0, j)),
            ],
            out_specs=pl.BlockSpec((tm, tn), lambda i, j, k: (i, j)),
            scratch_shapes=[pltpu.VMEM((tm, tn), jnp.float32)],
        ),
        compiler_params=pltpu.CompilerParams(
            dimension_semantics=("parallel", "parallel", "arbitrary"),
            vmem_limit_bytes=int(budget),
        ),
    )(x, w, b2d)


if __name__ == "__main__":
    key = jax.random.PRNGKey(0)
    k0, k1, k2, k3, k4, k5, k6, k7 = jax.random.split(key, 8)

    # --- module shape: AffineLayer(input_size=32, output_size=128), batch=8 -> path 1 ---
    batch, input_size, output_size = 8, 32, 128
    x = jax.random.normal(k0, (batch, input_size), dtype=jnp.float32)
    weights = jax.random.normal(k1, (input_size, output_size), dtype=jnp.float32)
    bias = jnp.zeros((output_size,), dtype=jnp.float32)
    out = jax.block_until_ready(affine_layer(x, weights, bias))
    ref = x @ weights + bias
    assert out.shape == (batch, output_size)
    assert jnp.allclose(out, ref, atol=2e-2, rtol=2e-2), "path-1 mismatch"

    # --- 2-D full-K path with resident W (non-multiple-of-8 row count) ---
    M, K, N = 500, 384, 640
    xa = jax.random.normal(k2, (M, K), dtype=jnp.float32) * (K ** -0.5)
    wa = jax.random.normal(k3, (K, N), dtype=jnp.float32)
    ba = jnp.linspace(-1.0, 1.0, N, dtype=jnp.float32)
    outa = jax.block_until_ready(affine_layer(xa, wa, ba))
    refa = xa @ wa + ba
    assert jnp.allclose(outa, refa, atol=5e-2, rtol=5e-2), "path-2 (resident W) mismatch"

    # --- 2-D full-K path where x is the cheaper operand to re-stream (j-outer grid) ---
    M, K, N = 1200, 512, 256
    xb = jax.random.normal(k4, (M, K), dtype=jnp.float32) * (K ** -0.5)
    wb = jax.random.normal(k5, (K, N), dtype=jnp.float32)
    bb = jnp.linspace(-0.5, 0.5, N, dtype=jnp.float32)
    outb = jax.block_until_ready(affine_layer(xb, wb, bb))
    refb = xb @ wb + bb
    assert jnp.allclose(outb, refb, atol=5e-2, rtol=5e-2), "path-2 (streamed x) mismatch"

    # --- 3-D K-reduction path with a non-dividing K tail (masked in-kernel, no host pad) ---
    M, K, N = 256, 4672, 512
    xc = jax.random.normal(k6, (M, K), dtype=jnp.float32) * (K ** -0.5)
    wc = jax.random.normal(k7, (K, N), dtype=jnp.float32)
    bc = jnp.linspace(-0.5, 0.5, N, dtype=jnp.float32)
    outc = jax.block_until_ready(affine_layer(xc, wc, bc))
    refc = xc @ wc + bc
    assert jnp.allclose(outc, refc, atol=5e-2, rtol=5e-2), "path-3 (K reduction) mismatch"

    print("KERNEL_OK")
</pallas_src>

<mosaic_0001>
module attributes {stable_mosaic.version = 11 : i64} {
  func.func @_affine_fused_kernel(%arg0: memref<8x32xf32, #tpu.memory_space<vmem>>, %arg1: memref<32x128xf32, #tpu.memory_space<vmem>>, %arg2: memref<1x128xf32, #tpu.memory_space<vmem>>, %arg3: memref<8x128xf32, #tpu.memory_space<vmem>>) attributes {dimension_semantics = [], scalar_prefetch = 0 : i64, scratch_operands = 0 : i64, tpu.core_type = #tpu.core_type<tc>} {
    %c0 = arith.constant 0 : index
    %c0_0 = arith.constant 0 : index
    %0 = vector.load %arg0[%c0, %c0_0] : memref<8x32xf32, #tpu.memory_space<vmem>>, vector<8x32xf32>
    %c0_1 = arith.constant 0 : index
    %c0_2 = arith.constant 0 : index
    %1 = vector.load %arg1[%c0_1, %c0_2] : memref<32x128xf32, #tpu.memory_space<vmem>>, vector<32x128xf32>
    %cst = arith.constant dense<0.000000e+00> : vector<8x128xf32>
    %2 = tpu.matmul %0, %1, %cst {dimension_numbers = #tpu.dot_dimension_numbers<[1], [0], [0], [1], [0, 0, 1, 1], [], []>} : vector<8x32xf32>, vector<32x128xf32>, vector<8x128xf32> -> vector<8x128xf32>
    %c0_3 = arith.constant 0 : index
    %c0_4 = arith.constant 0 : index
    %3 = vector.load %arg2[%c0_3, %c0_4] : memref<1x128xf32, #tpu.memory_space<vmem>>, vector<1x128xf32>
    %4 = vector.broadcast %3 : vector<1x128xf32> to vector<8x128xf32>
    %5 = arith.addf %2, %4 : vector<8x128xf32>
    %c0_5 = arith.constant 0 : index
    %c0_6 = arith.constant 0 : index
    %6 = vector.load %arg3[%c0_5, %c0_6] : memref<8x128xf32, #tpu.memory_space<vmem>>, vector<8x128xf32>
    tpu.vector_store %arg3[%c0_5, %c0_6], %5 {strides = array<i32>} : memref<8x128xf32, #tpu.memory_space<vmem>>, vector<8x128xf32>,
    return
  }
}

</mosaic_0001>

<llo_original>
// kernel: affine_layer.1
$region0: #{affine_layer.1}
  #allocation0 [shape = 'u32[]', space=smem, size = 0x4, offset = 0x4, fixed_abs, tag = 'smem constant byte address 0x4 - core index']
  #allocation1 [shape = 'u32[144,128]{1,0:T(1,128)}', space=vmem, size = 0x12000, scoped, tag = 'internal scratch']
  %s0 = inlined_call_operand.hbm [shape: f32[8,32], index: 0, kind: input, shape index: {}]
  %s1 = inlined_call_operand.hbm [shape: f32[32,128], index: 1, kind: input, shape index: {}]
  %s2 = inlined_call_operand.vmem [shape: f32[1,128], index: 2, kind: input, shape index: {}]
  %s3 = inlined_call_operand.hbm [shape: f32[8,128], index: 3, kind: output, shape index: {}]
  %s4 = sld [smem:[#allocation0]]
  $region30: #{affine_layer.1} parent=0
    _
  %s6 = ssub.s32 1, %s4
  %s7 = scalar_select 0, %s6, %s4
  $region1: #{affine_layer.1} parent=0
    #allocation2 [shape = 'u8[4096]{0}', space=vmem, size = 0x1000, scoped, tag = 'input window, operand 0, single buffered']
    #allocation3 [shape = 's32[1]{0}', space=sflag, size = 0x4, scoped, tag = 'scoped memory for affine_layer.1']
    #allocation4 [shape = 's32[1]{0}', space=sflag, size = 0x4, scoped, tag = 'scoped memory for affine_layer.1']
    #allocation5 [shape = 'u8[16384]{0}', space=vmem, size = 0x4000, scoped, tag = 'input window, operand 1, single buffered']
    #allocation6 [shape = 's32[1]{0}', space=sflag, size = 0x4, scoped, tag = 'scoped memory for affine_layer.1']
    #allocation7 [shape = 'u8[4096]{0}', space=vmem, size = 0x1000, scoped, tag = 'output window, operand 0, single buffered']
    %8 = vsyncpa [#allocation3], 0
    %9 = vsyncpa [#allocation6], 0
    %10 = vsyncpa [#allocation4], 0
    // Predicated region
    $region2: #{affine_layer.1} parent=1 // pred_check
      _
    $region3: #{affine_layer.1} parent=1 // pred_check_branch
      %12 = sbr.rel (0) target = $region5
    $region4: #{affine_layer.1} parent=1 // pred_region
      %s14 = ssub.s32 128, 128
      %15 = vsyncadd [#allocation3], %s14
      %s17 = sshll.u32 [#allocation2], 4
      %s18 = int_to_ptr.vmem [resolvable:$true] %s17
      %20 = dma.hbm_to_vmem [thread:$0]  %s0, 128, %s18, [#allocation3]
    $region5: #{affine_layer.1} parent=1 // pred_fallthru
      _
    // Predicated region
    $region6: #{affine_layer.1} parent=1 // pred_check
      _
    $region7: #{affine_layer.1} parent=1 // pred_check_branch
      %22 = sbr.rel (0) target = $region9
    $region8: #{affine_layer.1} parent=1 // pred_region
      %s24 = ssub.s32 512, 512
      %25 = vsyncadd [#allocation6], %s24
      %s26 = sshll.u32 [#allocation5], 4
      %s27 = int_to_ptr.vmem [resolvable:$true] %s26
      %32 = dma.hbm_to_vmem [thread:$0]  %s1, 512, %s27, [#allocation6], 128, 128, 8
    $region9: #{affine_layer.1} parent=1 // pred_fallthru
      _
    // Predicated region
    $region10: #{affine_layer.1} parent=1 // pred_check
      _
    $region11: #{affine_layer.1} parent=1 // pred_check_branch
      %34 = sbr.rel (0) target = $region13
    $region12: #{affine_layer.1} parent=1 // pred_region
      _
    $region13: #{affine_layer.1} parent=1 // pred_fallthru
      _
    // Predicated region
    $region14: #{affine_layer.1} parent=1 // pred_check
      _
    $region15: #{affine_layer.1} parent=1 // pred_check_branch
      %36 = sbr.rel (0) target = $region17
    $region16: #{affine_layer.1} parent=1 // pred_region
      %37 = dma.done [#allocation3], 128
    $region17: #{affine_layer.1} parent=1 // pred_fallthru
      _
    // Predicated region
    $region18: #{affine_layer.1} parent=1 // pred_check
      _
    $region19: #{affine_layer.1} parent=1 // pred_check_branch
      %39 = sbr.rel (0) target = $region21
    $region20: #{affine_layer.1} parent=1 // pred_region
      %40 = dma.done [#allocation6], 512
    $region21: #{affine_layer.1} parent=1 // pred_fallthru
      _
    %v41 = vld [vmem:[#allocation2] sm:$0xff]
    %v42 = vld [vmem:[#allocation5] sm:$0xff]
    %v43 = vld [vmem:[#allocation5 + $0x8] sm:$0xff]
    %v44 = vld [vmem:[#allocation5 + $0x10] sm:$0xff]
    %v45 = vld [vmem:[#allocation5 + $0x18] sm:$0xff]
    %v46 = vld [vmem:[%s2] sm:$0x1]
    %v48 = vlaneseq
    %v49 = vshrl.u32 %v48, 7
    %v50 = vsub.s32 0, %v49
    %v51 = vrot.slane %v46, %v50
    %vm53 = vcmask 261120
    %v55 = vsel %vm53, %v41, 0
    %57 = vmatprep.subr.mxu0 0.0
    %58 = vmatpush1.msra.mxu0 %v42
    %59 = vmatprep.subr.mxu0 0.0
    %60 = vmatpush1.msra.mxu0 %v43
    %61 = vmatprep.subr.mxu0 0.0
    %62 = vmatpush1.msra.mxu0 %v44
    %63 = vmatprep.subr.mxu0 0.0
    %64 = vmatpush1.msra.mxu0 %v45
    %65 = vmatprep.subr.mxu0 0.0
    %66 = vmatpush1.msra.mxu0 0.0
    %67 = vmatprep.subr.mxu0 0.0
    %68 = vmatpush1.msra.mxu0 0.0
    %69 = vmatprep.subr.mxu0 0.0
    %70 = vmatpush1.msra.mxu0 0.0
    %71 = vmatprep.subr.mxu0 0.0
    %72 = vmatpush1.msra.mxu0 0.0
    %73 = vmatprep.subr.mxu0 0.0
    %74 = vmatpush1.msra.mxu0 0.0
    %75 = vmatprep.subr.mxu0 0.0
    %76 = vmatpush1.msra.mxu0 0.0
    %77 = vmatprep.subr.mxu0 0.0
    %78 = vmatpush1.msra.mxu0 0.0
    %79 = vmatprep.subr.mxu0 0.0
    %80 = vmatpush1.msra.mxu0 0.0
    %81 = vmatprep.subr.mxu0 0.0
    %82 = vmatpush1.msra.mxu0 0.0
    %83 = vmatprep.subr.mxu0 0.0
    %84 = vmatpush1.msra.mxu0 0.0
    %85 = vmatprep.subr.mxu0 0.0
    %86 = vmatpush1.msra.mxu0 0.0
    %87 = vmatprep.subr.mxu0 0.0
    %88 = vmatpush1.msra.mxu0 0.0
    %89 = vmatprep.subr.mxu0 0.0
    %90 = vmatpush1.msra.mxu0 0.0
    %91 = vmatprep.subr.mxu0 0.0
    %92 = vmatpush1.msra.mxu0 0.0
    %93 = vmatprep.subr.mxu0 0.0
    %94 = vmatpush1.msra.mxu0 0.0
    %95 = vmatprep.subr.mxu0 0.0
    %96 = vmatpush1.msra.mxu0 0.0
    %97 = vmatprep.subr.mxu0 0.0
    %98 = vmatpush1.msra.mxu0 0.0
    %99 = vmatprep.subr.mxu0 0.0
    %100 = vmatpush1.msra.mxu0 0.0
    %101 = vmatprep.subr.mxu0 0.0
    %102 = vmatpush1.msra.mxu0 0.0
    %103 = vmatprep.subr.mxu0 0.0
    %104 = vmatpush1.msra.mxu0 0.0
    %105 = vmatprep.subr.mxu0 0.0
    %106 = vmatpush1.msra.mxu0 0.0
    %107 = vmatprep.subr.mxu0 0.0
    %108 = vmatpush1.msra.mxu0 0.0
    %109 = vmatprep.subr.mxu0 0.0
    %110 = vmatpush1.msra.mxu0 0.0
    %111 = vmatprep.subr.mxu0 0.0
    %112 = vmatpush1.msra.mxu0 0.0
    %113 = vmatprep.subr.mxu0 0.0
    %114 = vmatpush1.msra.mxu0 0.0
    %115 = vmatprep.subr.mxu0 0.0
    %116 = vmatpush1.msra.mxu0 0.0
    %117 = vmatprep.subr.mxu0 0.0
    %118 = vmatpush1.msra.mxu0 0.0
    %119 = vmatprep.subr.mxu0 0.0
    %120 = vmatpush1.msra.mxu0 0.0
    %121 = vmatprep.mubr.f32.mxu0 0.0
    %122 = vmatmul.mubr.f32.gmra.mrb[0].mxu0 %v55
    %v123 = vpop.f32.mrb[0].mxu0
    %v124 = vadd.f32 %v51, %v123
    %v125 = vpop.f32.mrb[0].mxu0
    %126 = vdwg.mxu0
    %127 = vst [vmem:[#allocation7] sm:$0xff] %v124
    // Predicated region
    $region22: #{affine_layer.1} parent=1 // pred_check
      _
    $region23: #{affine_layer.1} parent=1 // pred_check_branch
      %129 = sbr.rel (0) target = $region25
    $region24: #{affine_layer.1} parent=1 // pred_region
      %s131 = ssub.s32 128, 128
      %132 = vsyncadd [#allocation4], %s131
      %s134 = sshll.u32 [#allocation7], 4
      %s135 = int_to_ptr.vmem [resolvable:$true] %s134
      %137 = dma.vmem_to_hbm [thread:$0]  %s135, 128, %s3, [#allocation4]
    $region25: #{affine_layer.1} parent=1 // pred_fallthru
      _
    // Predicated region
    $region26: #{affine_layer.1} parent=1 // pred_check
      _
    $region27: #{affine_layer.1} parent=1 // pred_check_branch
      %139 = sbr.rel (0) target = $region29
    $region28: #{affine_layer.1} parent=1 // pred_region
      %140 = dma.done [#allocation4], 128
    $region29: #{affine_layer.1} parent=1 // pred_fallthru
      _
    %141 = vsyncpa [#allocation3], 1
    %142 = vsyncpa [#allocation6], 1
    %143 = vsyncpa [#allocation4], 1

</llo_original>
